<compile_context>
chip_gen: v7x
topology: tpu7x:2x2x1
jax: 0.10.0
libtpu: 0.0.40
codegen_flags: <defaults>
</compile_context>

<pallas_src>
import jax
import jax.numpy as jnp
from jax.experimental import pallas as pl
from jax.experimental.pallas import tpu as pltpu


def _round_up(a: int, b: int) -> int:
    return (a + b - 1) // b * b


def _cdiv(a: int, b: int) -> int:
    return (a + b - 1) // b


def _swiglu_kernel(x_ref, w_ref, v_ref, wb_ref, vb_ref, o_ref,
                   accw_ref, accv_ref):
    """Per-tile: accw += x @ W, accv += x @ V; on last K step apply bias+gate."""
    k = pl.program_id(2)
    x = x_ref[...]
    pw = jnp.dot(x, w_ref[...], preferred_element_type=jnp.float32)
    pv = jnp.dot(x, v_ref[...], preferred_element_type=jnp.float32)

    @pl.when(k == 0)
    def _first():
        accw_ref[...] = pw          # direct store: no zero-init RMW pass
        accv_ref[...] = pv

    @pl.when(k != 0)
    def _accum():
        accw_ref[...] += pw
        accv_ref[...] += pv

    @pl.when(k == pl.num_programs(2) - 1)
    def _finalize():
        w_out = accw_ref[...] + wb_ref[...].astype(jnp.float32)
        v_out = accv_ref[...] + vb_ref[...].astype(jnp.float32)
        gate = v_out * jax.nn.sigmoid(v_out)       # SiLU, always f32
        o_ref[...] = (w_out * gate).astype(o_ref.dtype)


def _vmem_cap_bytes() -> int:
    try:
        cap = getattr(pltpu.get_tpu_info(), "vmem_capacity_bytes", None)
        if cap:
            return int(cap)
    except Exception:
        pass
    return 64 * 1024 * 1024     # conservative (v7x per-TC) fallback


def swiglu_pallas(x, w, w_b, v, v_b, *, tm=512, tn=1024, tk=512,
                  compute_dtype=None, out_dtype=None,
                  weight_pipeline_depth=None):
    """SwiGLU forward: (x @ w + w_b) * SiLU(x @ v + v_b).

    x: (M, K); w, v: (K, N) (transposed vs torch nn.Linear weight); biases (N,).
    compute_dtype: optional MXU input dtype (jnp.bfloat16 recommended on
                   v5e/v6e/v7x); accumulation and gate math stay f32.
    out_dtype:     output dtype (use bf16 when downstream accepts it to halve
                   output HBM traffic); defaults to x.dtype.
    weight_pipeline_depth: optional pipeline depth for the weight streams
                   (e.g. 3 for small-M decode shapes on v7x).
    """
    M, K = x.shape
    Kw, N = w.shape
    assert Kw == K and v.shape == (K, N)
    assert w_b.shape == (N,) and v_b.shape == (N,)
    out_dtype = out_dtype if out_dtype is not None else x.dtype
    in_dtype = compute_dtype if compute_dtype is not None else x.dtype
    in_bytes = jnp.dtype(in_dtype).itemsize
    out_bytes = jnp.dtype(out_dtype).itemsize

    # ---- tile sizes (lane/sublane aligned, shrunk for small problems) ----
    tm = min(tm, _round_up(M, 8))                 # multiple of 8
    tn = min(tn, _round_up(N, 128))               # multiple of 128 (or == N)
    tk_eff = K if K <= tk else tk                 # single-block K if it fits

    # ---- generation-aware VMEM budget (~80% of physical per-TC VMEM) ----
    vmem_limit = int(0.8 * _vmem_cap_bytes())

    def vmem_need(tm_, tn_, tk_):
        return (2 * (tm_ * tk_ + 2 * tk_ * tn_ + 2 * tn_) * in_bytes  # x, W, V, biases (dbl-buf)
                + 2 * tm_ * tn_ * out_bytes                            # output (dbl-buf)
                + 2 * tm_ * tn_ * 4)                                   # two f32 accumulators

    while vmem_need(tm, tn, tk_eff) > vmem_limit:
        if tn > 256:
            tn = _round_up(tn // 2, 128)
        elif tm > 256:
            tm = max(8, _round_up(tm // 2, 8))
        elif tk_eff > 256:
            tk_eff = max(128, tk_eff // 2)
        else:
            break

    # ---- megacore-friendly grid: keep >= 2 parallel (M x N) tiles ----
    if _cdiv(M, tm) * _cdiv(N, tn) < 2 and N > 128:
        tn = min(tn, _round_up(_cdiv(N, 2), 128))

    # ---- only the reduction (K) dim needs zero padding ----
    Kp = _round_up(K, tk_eff)
    xp, wp, vp = x, w, v
    if Kp != K:
        xp = jnp.zeros((M, Kp), x.dtype).at[:, :K].set(x)
        wp = jnp.zeros((Kp, N), w.dtype).at[:K, :].set(w)
        vp = jnp.zeros((Kp, N), v.dtype).at[:K, :].set(v)

    if compute_dtype is not None:
        xp = xp.astype(compute_dtype)
        wp = wp.astype(compute_dtype)
        vp = vp.astype(compute_dtype)

    wb2 = w_b.reshape(1, N)
    vb2 = v_b.reshape(1, N)

    gm, gn, gk = _cdiv(M, tm), _cdiv(N, tn), Kp // tk_eff
    grid = (gm, gn, gk)

    def weight_spec():
        if weight_pipeline_depth is not None and weight_pipeline_depth != 2:
            return pl.BlockSpec((tk_eff, tn), lambda i, j, k: (k, j),
                                pipeline_mode=pl.Buffered(weight_pipeline_depth))
        return pl.BlockSpec((tk_eff, tn), lambda i, j, k: (k, j))

    cost = pl.CostEstimate(
        flops=2 * M * Kp * N * 2,
        transcendentals=M * N,
        bytes_accessed=int(gn * M * Kp * in_bytes           # x re-streamed per N tile
                           + gm * 2 * Kp * N * in_bytes     # W, V re-streamed per M tile
                           + 2 * N * 4 + M * N * out_bytes),
    )

    out = pl.pallas_call(
        _swiglu_kernel,
        out_shape=jax.ShapeDtypeStruct((M, N), out_dtype),
        grid_spec=pltpu.PrefetchScalarGridSpec(
            num_scalar_prefetch=0,
            grid=grid,
            in_specs=[
                pl.BlockSpec((tm, tk_eff), lambda i, j, k: (i, k)),   # x
                weight_spec(),                                        # W
                weight_spec(),                                        # V
                pl.BlockSpec((1, tn), lambda i, j, k: (0, j)),        # w bias
                pl.BlockSpec((1, tn), lambda i, j, k: (0, j)),        # v bias
            ],
            out_specs=pl.BlockSpec((tm, tn), lambda i, j, k: (i, j)),
            scratch_shapes=[pltpu.VMEM((tm, tn), jnp.float32),
                            pltpu.VMEM((tm, tn), jnp.float32)],
        ),
        compiler_params=pltpu.CompilerParams(
            dimension_semantics=("parallel", "parallel", "arbitrary"),
            vmem_limit_bytes=vmem_limit,
        ),
        cost_estimate=cost,
    )(xp, wp, vp, wb2, vb2)

    return out


def swiglu_ref(x, w, w_b, v, v_b):
    w_out = x @ w + w_b
    v_out = x @ v + v_b
    return w_out * (v_out * jax.nn.sigmoid(v_out))


if __name__ == "__main__":
    batch, seq = 2, 8
    input_dim, output_dim = 32, 64

    key = jax.random.PRNGKey(0)
    kx, kw, kwb, kv, kvb = jax.random.split(key, 5)

    x = jax.random.normal(kx, (batch, seq, input_dim), dtype=jnp.float32)
    # PyTorch nn.Linear stores (out, in); kernel uses (in, out).
    w = jax.random.normal(kw, (input_dim, output_dim), dtype=jnp.float32) * 0.1
    w_b = jax.random.normal(kwb, (output_dim,), dtype=jnp.float32) * 0.1
    v = jax.random.normal(kv, (input_dim, output_dim), dtype=jnp.float32) * 0.1
    v_b = jax.random.normal(kvb, (output_dim,), dtype=jnp.float32) * 0.1

    x2d = x.reshape(batch * seq, input_dim)
    ref = swiglu_ref(x2d, w, w_b, v, v_b).reshape(batch, seq, output_dim)

    # f32 path (exact vs reference).
    out2d = swiglu_pallas(x2d, w, w_b, v, v_b)
    out = out2d.reshape(batch, seq, output_dim)
    jax.block_until_ready(out)
    assert out.shape == (batch, seq, output_dim)
    assert jnp.allclose(out, ref, atol=1e-5, rtol=1e-5), "mismatch vs reference (f32)"

    # bf16-MXU path (recommended on v5e/v6e/v7x): bf16 inputs, f32 acc + gate.
    out_bf = swiglu_pallas(x2d, w, w_b, v, v_b, compute_dtype=jnp.bfloat16)
    out_bf = out_bf.reshape(batch, seq, output_dim)
    jax.block_until_ready(out_bf)
    assert jnp.allclose(out_bf, ref, atol=3e-2, rtol=3e-2), "mismatch vs reference (bf16)"

    print("KERNEL_OK")
</pallas_src>

<mosaic_0001>
module attributes {stable_mosaic.version = 11 : i64} {
  func.func @_swiglu_kernel(%arg0: i32, %arg1: i32, %arg2: i32, %arg3: memref<16x32xf32, #tpu.memory_space<vmem>>, %arg4: memref<32x128xf32, #tpu.memory_space<vmem>>, %arg5: memref<32x128xf32, #tpu.memory_space<vmem>>, %arg6: memref<1x128xf32, #tpu.memory_space<vmem>>, %arg7: memref<1x128xf32, #tpu.memory_space<vmem>>, %arg8: memref<16x128xf32, #tpu.memory_space<vmem>>, %arg9: memref<16x128xf32, #tpu.memory_space<vmem>>, %arg10: memref<16x128xf32, #tpu.memory_space<vmem>>) attributes {dimension_semantics = [#tpu.dimension_semantics<parallel>, #tpu.dimension_semantics<parallel>, #tpu.dimension_semantics<arbitrary>], iteration_bounds = array<i64: 1, 1, 1>, scalar_prefetch = 0 : i64, scratch_operands = 2 : i64, tpu.core_type = #tpu.core_type<tc>, window_params = [{transform_indices = @transform_0, window_bounds = array<i64: 16, 32>}, {transform_indices = @transform_1, window_bounds = array<i64: 32, 128>}, {transform_indices = @transform_2, window_bounds = array<i64: 32, 128>}, {transform_indices = @transform_3, window_bounds = array<i64: 1, 128>}, {transform_indices = @transform_4, window_bounds = array<i64: 1, 128>}, {transform_indices = @transform_5, window_bounds = array<i64: 16, 128>}]} {
    %c0 = arith.constant 0 : index
    %c0_0 = arith.constant 0 : index
    %0 = vector.load %arg3[%c0, %c0_0] : memref<16x32xf32, #tpu.memory_space<vmem>>, vector<16x32xf32>
    %c0_1 = arith.constant 0 : index
    %c0_2 = arith.constant 0 : index
    %1 = vector.load %arg4[%c0_1, %c0_2] : memref<32x128xf32, #tpu.memory_space<vmem>>, vector<32x128xf32>
    %cst = arith.constant dense<0.000000e+00> : vector<16x128xf32>
    %2 = tpu.matmul %0, %1, %cst {dimension_numbers = #tpu.dot_dimension_numbers<[1], [0], [0], [1], [0, 0, 1, 1], [], []>} : vector<16x32xf32>, vector<32x128xf32>, vector<16x128xf32> -> vector<16x128xf32>
    %c0_3 = arith.constant 0 : index
    %c0_4 = arith.constant 0 : index
    %3 = vector.load %arg5[%c0_3, %c0_4] : memref<32x128xf32, #tpu.memory_space<vmem>>, vector<32x128xf32>
    %cst_5 = arith.constant dense<0.000000e+00> : vector<16x128xf32>
    %4 = tpu.matmul %0, %3, %cst_5 {dimension_numbers = #tpu.dot_dimension_numbers<[1], [0], [0], [1], [0, 0, 1, 1], [], []>} : vector<16x32xf32>, vector<32x128xf32>, vector<16x128xf32> -> vector<16x128xf32>
    %c0_i32 = arith.constant 0 : i32
    %5 = arith.cmpi eq, %arg2, %c0_i32 : i32
    %6 = arith.extui %5 : i1 to i32
    %c0_i32_6 = arith.constant 0 : i32
    %7 = arith.cmpi ne, %6, %c0_i32_6 : i32
    scf.if %7 {
      %c0_11 = arith.constant 0 : index
      %c0_12 = arith.constant 0 : index
      %14 = vector.load %arg9[%c0_11, %c0_12] : memref<16x128xf32, #tpu.memory_space<vmem>>, vector<16x128xf32>
      tpu.vector_store %arg9[%c0_11, %c0_12], %2 {strides = array<i32>} : memref<16x128xf32, #tpu.memory_space<vmem>>, vector<16x128xf32>,
      %c0_13 = arith.constant 0 : index
      %c0_14 = arith.constant 0 : index
      %15 = vector.load %arg10[%c0_13, %c0_14] : memref<16x128xf32, #tpu.memory_space<vmem>>, vector<16x128xf32>
      tpu.vector_store %arg10[%c0_13, %c0_14], %4 {strides = array<i32>} : memref<16x128xf32, #tpu.memory_space<vmem>>, vector<16x128xf32>,
    } else {
    }
    %c0_i32_7 = arith.constant 0 : i32
    %8 = arith.cmpi ne, %arg2, %c0_i32_7 : i32
    %9 = arith.extui %8 : i1 to i32
    %c0_i32_8 = arith.constant 0 : i32
    %10 = arith.cmpi ne, %9, %c0_i32_8 : i32
    scf.if %10 {
      %c0_11 = arith.constant 0 : index
      %c0_12 = arith.constant 0 : index
      %14 = vector.load %arg9[%c0_11, %c0_12] : memref<16x128xf32, #tpu.memory_space<vmem>>, vector<16x128xf32>
      %15 = arith.addf %14, %2 : vector<16x128xf32>
      %c0_13 = arith.constant 0 : index
      %c0_14 = arith.constant 0 : index
      %16 = vector.load %arg9[%c0_13, %c0_14] : memref<16x128xf32, #tpu.memory_space<vmem>>, vector<16x128xf32>
      tpu.vector_store %arg9[%c0_13, %c0_14], %15 {strides = array<i32>} : memref<16x128xf32, #tpu.memory_space<vmem>>, vector<16x128xf32>,
      %c0_15 = arith.constant 0 : index
      %c0_16 = arith.constant 0 : index
      %17 = vector.load %arg10[%c0_15, %c0_16] : memref<16x128xf32, #tpu.memory_space<vmem>>, vector<16x128xf32>
      %18 = arith.addf %17, %4 : vector<16x128xf32>
      %c0_17 = arith.constant 0 : index
      %c0_18 = arith.constant 0 : index
      %19 = vector.load %arg10[%c0_17, %c0_18] : memref<16x128xf32, #tpu.memory_space<vmem>>, vector<16x128xf32>
      tpu.vector_store %arg10[%c0_17, %c0_18], %18 {strides = array<i32>} : memref<16x128xf32, #tpu.memory_space<vmem>>, vector<16x128xf32>,
    } else {
    }
    %c0_i32_9 = arith.constant 0 : i32
    %11 = arith.cmpi eq, %arg2, %c0_i32_9 : i32
    %12 = arith.extui %11 : i1 to i32
    %c0_i32_10 = arith.constant 0 : i32
    %13 = arith.cmpi ne, %12, %c0_i32_10 : i32
    scf.if %13 {
      %c0_11 = arith.constant 0 : index
      %c0_12 = arith.constant 0 : index
      %14 = vector.load %arg9[%c0_11, %c0_12] : memref<16x128xf32, #tpu.memory_space<vmem>>, vector<16x128xf32>
      %c0_13 = arith.constant 0 : index
      %c0_14 = arith.constant 0 : index
      %15 = vector.load %arg6[%c0_13, %c0_14] : memref<1x128xf32, #tpu.memory_space<vmem>>, vector<1x128xf32>
      %16 = vector.broadcast %15 : vector<1x128xf32> to vector<16x128xf32>
      %17 = arith.addf %14, %16 : vector<16x128xf32>
      %c0_15 = arith.constant 0 : index
      %c0_16 = arith.constant 0 : index
      %18 = vector.load %arg10[%c0_15, %c0_16] : memref<16x128xf32, #tpu.memory_space<vmem>>, vector<16x128xf32>
      %c0_17 = arith.constant 0 : index
      %c0_18 = arith.constant 0 : index
      %19 = vector.load %arg7[%c0_17, %c0_18] : memref<1x128xf32, #tpu.memory_space<vmem>>, vector<1x128xf32>
      %20 = vector.broadcast %19 : vector<1x128xf32> to vector<16x128xf32>
      %21 = arith.addf %18, %20 : vector<16x128xf32>
      %22 = arith.negf %21 : vector<16x128xf32>
      %23 = math.exp %22 : vector<16x128xf32>
      %cst_19 = arith.constant 1.000000e+00 : f32
      %24 = vector.broadcast %cst_19 : f32 to vector<16x128xf32>
      %25 = arith.addf %24, %23 : vector<16x128xf32>
      %26 = arith.divf %24, %25 : vector<16x128xf32>
      %27 = arith.mulf %21, %26 : vector<16x128xf32>
      %28 = arith.mulf %17, %27 : vector<16x128xf32>
      %c0_20 = arith.constant 0 : index
      %c0_21 = arith.constant 0 : index
      %29 = vector.load %arg8[%c0_20, %c0_21] : memref<16x128xf32, #tpu.memory_space<vmem>>, vector<16x128xf32>
      tpu.vector_store %arg8[%c0_20, %c0_21], %28 {strides = array<i32>} : memref<16x128xf32, #tpu.memory_space<vmem>>, vector<16x128xf32>,
    } else {
    }
    return
  }
  func.func @transform_0(%arg0: i32, %arg1: i32, %arg2: i32) -> (i32, i32) {
    %c0_i32 = arith.constant 0 : i32
    return %arg0, %arg2 : i32, i32
  }
  func.func @transform_1(%arg0: i32, %arg1: i32, %arg2: i32) -> (i32, i32) {
    %c0_i32 = arith.constant 0 : i32
    return %arg2, %arg1 : i32, i32
  }
  func.func @transform_2(%arg0: i32, %arg1: i32, %arg2: i32) -> (i32, i32) {
    %c0_i32 = arith.constant 0 : i32
    return %arg2, %arg1 : i32, i32
  }
  func.func @transform_3(%arg0: i32, %arg1: i32, %arg2: i32) -> (i32, i32) {
    %c0_i32 = arith.constant 0 : i32
    %c0_i32_0 = arith.constant 0 : i32
    return %c0_i32, %arg1 : i32, i32
  }
  func.func @transform_4(%arg0: i32, %arg1: i32, %arg2: i32) -> (i32, i32) {
    %c0_i32 = arith.constant 0 : i32
    %c0_i32_0 = arith.constant 0 : i32
    return %c0_i32, %arg1 : i32, i32
  }
  func.func @transform_5(%arg0: i32, %arg1: i32, %arg2: i32) -> (i32, i32) {
    %c0_i32 = arith.constant 0 : i32
    return %arg0, %arg1 : i32, i32
  }
}

</mosaic_0001>

<llo_original>
// kernel: tpu_custom_call.1
$region0: #{tpu_custom_call.1}
  #allocation0 [shape = 'u32[]', space=smem, size = 0x4, offset = 0x4, fixed_abs, tag = 'smem constant byte address 0x4 - core index']
  #allocation1 [shape = 'u32[144,128]{1,0:T(1,128)}', space=vmem, size = 0x12000, scoped, tag = 'internal scratch']
  #allocation2 [shape = 'f32[16,128]{1,0:T(8,128)}', space=vmem, size = 0x2000, scoped, tag = 'scratch operand']
  #allocation3 [shape = 'f32[16,128]{1,0:T(8,128)}', space=vmem, size = 0x2000, scoped, tag = 'scratch operand']
  %s0 = inlined_call_operand.hbm [shape: f32[16,32], index: 0, kind: input, shape index: {}]
  %s1 = inlined_call_operand.hbm [shape: f32[32,64], index: 1, kind: input, shape index: {}]
  %s2 = inlined_call_operand.hbm [shape: f32[32,64], index: 2, kind: input, shape index: {}]
  %s3 = inlined_call_operand.vmem [shape: f32[1,64], index: 3, kind: input, shape index: {}]
  %s4 = inlined_call_operand.vmem [shape: f32[1,64], index: 4, kind: input, shape index: {}]
  %s5 = inlined_call_operand.hbm [shape: f32[16,64], index: 5, kind: output, shape index: {}]
  %s6 = sld [smem:[#allocation0]]
  $region54: #{tpu_custom_call.1} parent=0
    _
  %s8 = ssub.s32 1, %s6
  %s9 = scalar_select 0, %s8, %s6
  $region1: #{tpu_custom_call.1} parent=0
    #allocation4 [shape = 'u8[8192]{0}', space=vmem, size = 0x2000, scoped, tag = 'input window, operand 0, single buffered']
    #allocation5 [shape = 's32[1]{0}', space=sflag, size = 0x4, scoped, tag = 'scoped memory for tpu_custom_call.1']
    #allocation6 [shape = 's32[1]{0}', space=sflag, size = 0x4, scoped, tag = 'scoped memory for tpu_custom_call.1']
    #allocation7 [shape = 'u8[16384]{0}', space=vmem, size = 0x4000, scoped, tag = 'input window, operand 1, single buffered']
    #allocation8 [shape = 's32[1]{0}', space=sflag, size = 0x4, scoped, tag = 'scoped memory for tpu_custom_call.1']
    #allocation9 [shape = 'u8[16384]{0}', space=vmem, size = 0x4000, scoped, tag = 'input window, operand 2, single buffered']
    #allocation10 [shape = 'u8[8192]{0}', space=vmem, size = 0x2000, scoped, tag = 'output window, operand 0, single buffered']
    %10 = vsyncpa [#allocation5], 0
    %11 = vsyncpa [#allocation8], 0
    %12 = vsyncpa [#allocation6], 0
    // Predicated region
    $region2: #{tpu_custom_call.1} parent=1 // pred_check
      _
    $region3: #{tpu_custom_call.1} parent=1 // pred_check_branch
      %14 = sbr.rel (0) target = $region5
    $region4: #{tpu_custom_call.1} parent=1 // pred_region
      %s16 = ssub.s32 256, 256
      %17 = vsyncadd [#allocation5], %s16
      %s18 = sshll.u32 [#allocation4], 4
      %s19 = int_to_ptr.vmem [resolvable:$true] %s18
      %24 = dma.hbm_to_vmem [thread:$0]  %s0, 256, %s19, [#allocation5], 128, 128, 8
    $region5: #{tpu_custom_call.1} parent=1 // pred_fallthru
      _
    // Predicated region
    $region6: #{tpu_custom_call.1} parent=1 // pred_check
      _
    $region7: #{tpu_custom_call.1} parent=1 // pred_check_branch
      %26 = sbr.rel (0) target = $region9
    $region8: #{tpu_custom_call.1} parent=1 // pred_region
      %s28 = ssub.s32 512, 512
      %29 = vsyncadd [#allocation8], %s28
      %s30 = sshll.u32 [#allocation7], 4
      %s31 = int_to_ptr.vmem [resolvable:$true] %s30
      %36 = dma.hbm_to_vmem [thread:$0]  %s1, 512, %s31, [#allocation8], 128, 128, 8
    $region9: #{tpu_custom_call.1} parent=1 // pred_fallthru
      _
    // Predicated region
    $region10: #{tpu_custom_call.1} parent=1 // pred_check
      _
    $region11: #{tpu_custom_call.1} parent=1 // pred_check_branch
      %38 = sbr.rel (0) target = $region13
    $region12: #{tpu_custom_call.1} parent=1 // pred_region
      %s40 = ssub.s32 512, 512
      %41 = vsyncadd [#allocation8], %s40
      %s42 = sshll.u32 [#allocation9], 4
      %s43 = int_to_ptr.vmem [resolvable:$true] %s42
      %48 = dma.hbm_to_vmem [thread:$0]  %s2, 512, %s43, [#allocation8], 128, 128, 8
    $region13: #{tpu_custom_call.1} parent=1 // pred_fallthru
      _
    // Predicated region
    $region14: #{tpu_custom_call.1} parent=1 // pred_check
      _
    $region15: #{tpu_custom_call.1} parent=1 // pred_check_branch
      %50 = sbr.rel (0) target = $region17
    $region16: #{tpu_custom_call.1} parent=1 // pred_region
      _
    $region17: #{tpu_custom_call.1} parent=1 // pred_fallthru
      _
    // Predicated region
    $region18: #{tpu_custom_call.1} parent=1 // pred_check
      _
    $region19: #{tpu_custom_call.1} parent=1 // pred_check_branch
      %52 = sbr.rel (0) target = $region21
    $region20: #{tpu_custom_call.1} parent=1 // pred_region
      _
    $region21: #{tpu_custom_call.1} parent=1 // pred_fallthru
      _
    // Predicated region
    $region22: #{tpu_custom_call.1} parent=1 // pred_check
      _
    $region23: #{tpu_custom_call.1} parent=1 // pred_check_branch
      %54 = sbr.rel (0) target = $region25
    $region24: #{tpu_custom_call.1} parent=1 // pred_region
      %55 = dma.done [#allocation5], 256
    $region25: #{tpu_custom_call.1} parent=1 // pred_fallthru
      _
    // Predicated region
    $region26: #{tpu_custom_call.1} parent=1 // pred_check
      _
    $region27: #{tpu_custom_call.1} parent=1 // pred_check_branch
      %57 = sbr.rel (0) target = $region29
    $region28: #{tpu_custom_call.1} parent=1 // pred_region
      %58 = dma.done [#allocation8], 512
    $region29: #{tpu_custom_call.1} parent=1 // pred_fallthru
      _
    // Predicated region
    $region30: #{tpu_custom_call.1} parent=1 // pred_check
      _
    $region31: #{tpu_custom_call.1} parent=1 // pred_check_branch
      %60 = sbr.rel (0) target = $region33
    $region32: #{tpu_custom_call.1} parent=1 // pred_region
      %61 = dma.done [#allocation8], 512
    $region33: #{tpu_custom_call.1} parent=1 // pred_fallthru
      _
    %v62 = vld [vmem:[#allocation4] sm:$0xff]
    %v63 = vld [vmem:[#allocation4 + $0x8] sm:$0xff]
    %v64 = vld [vmem:[#allocation7] sm:$0xff]
    %v65 = vld [vmem:[#allocation7 + $0x8] sm:$0xff]
    %v66 = vld [vmem:[#allocation7 + $0x10] sm:$0xff]
    %v67 = vld [vmem:[#allocation7 + $0x18] sm:$0xff]
    %vm68 = vcmask 261120
    %v70 = vsel %vm68, %v62, 0
    %v73 = vsel %vm68, %v63, 0
    %75 = vmatprep.subr.mxu0 0.0
    %76 = vmatpush1.msra.mxu0 %v64
    %77 = vmatprep.subr.mxu0 0.0
    %78 = vmatpush1.msra.mxu0 %v65
    %79 = vmatprep.subr.mxu0 0.0
    %80 = vmatpush1.msra.mxu0 %v66
    %81 = vmatprep.subr.mxu0 0.0
    %82 = vmatpush1.msra.mxu0 %v67
    %83 = vmatprep.subr.mxu0 0.0
    %84 = vmatpush1.msra.mxu0 0.0
    %85 = vmatprep.subr.mxu0 0.0
    %86 = vmatpush1.msra.mxu0 0.0
    %87 = vmatprep.subr.mxu0 0.0
    %88 = vmatpush1.msra.mxu0 0.0
    %89 = vmatprep.subr.mxu0 0.0
    %90 = vmatpush1.msra.mxu0 0.0
    %91 = vmatprep.subr.mxu0 0.0
    %92 = vmatpush1.msra.mxu0 0.0
    %93 = vmatprep.subr.mxu0 0.0
    %94 = vmatpush1.msra.mxu0 0.0
    %95 = vmatprep.subr.mxu0 0.0
    %96 = vmatpush1.msra.mxu0 0.0
    %97 = vmatprep.subr.mxu0 0.0
    %98 = vmatpush1.msra.mxu0 0.0
    %99 = vmatprep.subr.mxu0 0.0
    %100 = vmatpush1.msra.mxu0 0.0
    %101 = vmatprep.subr.mxu0 0.0
    %102 = vmatpush1.msra.mxu0 0.0
    %103 = vmatprep.subr.mxu0 0.0
    %104 = vmatpush1.msra.mxu0 0.0
    %105 = vmatprep.subr.mxu0 0.0
    %106 = vmatpush1.msra.mxu0 0.0
    %107 = vmatprep.subr.mxu0 0.0
    %108 = vmatpush1.msra.mxu0 0.0
    %109 = vmatprep.subr.mxu0 0.0
    %110 = vmatpush1.msra.mxu0 0.0
    %111 = vmatprep.subr.mxu0 0.0
    %112 = vmatpush1.msra.mxu0 0.0
    %113 = vmatprep.subr.mxu0 0.0
    %114 = vmatpush1.msra.mxu0 0.0
    %115 = vmatprep.subr.mxu0 0.0
    %116 = vmatpush1.msra.mxu0 0.0
    %117 = vmatprep.subr.mxu0 0.0
    %118 = vmatpush1.msra.mxu0 0.0
    %119 = vmatprep.subr.mxu0 0.0
    %120 = vmatpush1.msra.mxu0 0.0
    %121 = vmatprep.subr.mxu0 0.0
    %122 = vmatpush1.msra.mxu0 0.0
    %123 = vmatprep.subr.mxu0 0.0
    %124 = vmatpush1.msra.mxu0 0.0
    %125 = vmatprep.subr.mxu0 0.0
    %126 = vmatpush1.msra.mxu0 0.0
    %127 = vmatprep.subr.mxu0 0.0
    %128 = vmatpush1.msra.mxu0 0.0
    %129 = vmatprep.subr.mxu0 0.0
    %130 = vmatpush1.msra.mxu0 0.0
    %131 = vmatprep.subr.mxu0 0.0
    %132 = vmatpush1.msra.mxu0 0.0
    %133 = vmatprep.subr.mxu0 0.0
    %134 = vmatpush1.msra.mxu0 0.0
    %135 = vmatprep.subr.mxu0 0.0
    %136 = vmatpush1.msra.mxu0 0.0
    %137 = vmatprep.subr.mxu0 0.0
    %138 = vmatpush1.msra.mxu0 0.0
    %139 = vmatprep.mubr.f32.mxu0 0.0
    %140 = vmatmul.mubr.f32.gmra.mrb[0].mxu0 %v70
    %v141 = vpop.f32.mrb[0].mxu0
    %v142 = vadd.f32 0.0, %v141
    %v143 = vpop.f32.mrb[0].mxu0
    %144 = vmatprep.mubr.f32.mxu0 0.0
    %145 = vmatmul.mubr.f32.gmra.mrb[0].mxu0 %v73
    %v146 = vpop.f32.mrb[0].mxu0
    %v147 = vadd.f32 0.0, %v146
    %v148 = vpop.f32.mrb[0].mxu0
    %149 = vdwg.mxu0
    %v150 = vld [vmem:[#allocation9] sm:$0xff]
    %v151 = vld [vmem:[#allocation9 + $0x8] sm:$0xff]
    %v152 = vld [vmem:[#allocation9 + $0x10] sm:$0xff]
    %v153 = vld [vmem:[#allocation9 + $0x18] sm:$0xff]
    %154 = vmatprep.subr.mxu0 0.0
    %155 = vmatpush1.msra.mxu0 %v150
    %156 = vmatprep.subr.mxu0 0.0
    %157 = vmatpush1.msra.mxu0 %v151
    %158 = vmatprep.subr.mxu0 0.0
    %159 = vmatpush1.msra.mxu0 %v152
    %160 = vmatprep.subr.mxu0 0.0
    %161 = vmatpush1.msra.mxu0 %v153
    %162 = vmatprep.subr.mxu0 0.0
    %163 = vmatpush1.msra.mxu0 0.0
    %164 = vmatprep.subr.mxu0 0.0
    %165 = vmatpush1.msra.mxu0 0.0
    %166 = vmatprep.subr.mxu0 0.0
    %167 = vmatpush1.msra.mxu0 0.0
    %168 = vmatprep.subr.mxu0 0.0
    %169 = vmatpush1.msra.mxu0 0.0
    %170 = vmatprep.subr.mxu0 0.0
    %171 = vmatpush1.msra.mxu0 0.0
    %172 = vmatprep.subr.mxu0 0.0
    %173 = vmatpush1.msra.mxu0 0.0
    %174 = vmatprep.subr.mxu0 0.0
    %175 = vmatpush1.msra.mxu0 0.0
    %176 = vmatprep.subr.mxu0 0.0
    %177 = vmatpush1.msra.mxu0 0.0
    %178 = vmatprep.subr.mxu0 0.0
    %179 = vmatpush1.msra.mxu0 0.0
    %180 = vmatprep.subr.mxu0 0.0
    %181 = vmatpush1.msra.mxu0 0.0
    %182 = vmatprep.subr.mxu0 0.0
    %183 = vmatpush1.msra.mxu0 0.0
    %184 = vmatprep.subr.mxu0 0.0
    %185 = vmatpush1.msra.mxu0 0.0
    %186 = vmatprep.subr.mxu0 0.0
    %187 = vmatpush1.msra.mxu0 0.0
    %188 = vmatprep.subr.mxu0 0.0
    %189 = vmatpush1.msra.mxu0 0.0
    %190 = vmatprep.subr.mxu0 0.0
    %191 = vmatpush1.msra.mxu0 0.0
    %192 = vmatprep.subr.mxu0 0.0
    %193 = vmatpush1.msra.mxu0 0.0
    %194 = vmatprep.subr.mxu0 0.0
    %195 = vmatpush1.msra.mxu0 0.0
    %196 = vmatprep.subr.mxu0 0.0
    %197 = vmatpush1.msra.mxu0 0.0
    %198 = vmatprep.subr.mxu0 0.0
    %199 = vmatpush1.msra.mxu0 0.0
    %200 = vmatprep.subr.mxu0 0.0
    %201 = vmatpush1.msra.mxu0 0.0
    %202 = vmatprep.subr.mxu0 0.0
    %203 = vmatpush1.msra.mxu0 0.0
    %204 = vmatprep.subr.mxu0 0.0
    %205 = vmatpush1.msra.mxu0 0.0
    %206 = vmatprep.subr.mxu0 0.0
    %207 = vmatpush1.msra.mxu0 0.0
    %208 = vmatprep.subr.mxu0 0.0
    %209 = vmatpush1.msra.mxu0 0.0
    %210 = vmatprep.subr.mxu0 0.0
    %211 = vmatpush1.msra.mxu0 0.0
    %212 = vmatprep.subr.mxu0 0.0
    %213 = vmatpush1.msra.mxu0 0.0
    %214 = vmatprep.subr.mxu0 0.0
    %215 = vmatpush1.msra.mxu0 0.0
    %216 = vmatprep.subr.mxu0 0.0
    %217 = vmatpush1.msra.mxu0 0.0
    %218 = vmatprep.mubr.f32.mxu0 0.0
    %219 = vmatmul.mubr.f32.gmra.mrb[0].mxu0 %v70
    %v220 = vpop.f32.mrb[0].mxu0
    %v221 = vadd.f32 0.0, %v220
    %v222 = vpop.f32.mrb[0].mxu0
    %223 = vmatprep.mubr.f32.mxu0 0.0
    %224 = vmatmul.mubr.f32.gmra.mrb[0].mxu0 %v73
    %v225 = vpop.f32.mrb[0].mxu0
    %v226 = vadd.f32 0.0, %v225
    %v227 = vpop.f32.mrb[0].mxu0
    %228 = vdwg.mxu0
    %p229 = scmp.eq.s32.totalorder 0, 0
    // Predicated region
    $region34: #{tpu_custom_call.1} parent=1 // pred_check
      %p230 = pneg %p229
    $region35: #{tpu_custom_call.1} parent=1 // pred_check_branch
      %232 = sbr.rel (%p230) target = $region37
    $region36: #{tpu_custom_call.1} parent=1 // pred_region
      %233 = vst [vmem:[#allocation2] sm:$0xff] %v142
      %234 = vst [vmem:[#allocation2 + $0x8] sm:$0xff] %v147
      %235 = vst [vmem:[#allocation3] sm:$0xff] %v221
      %236 = vst [vmem:[#allocation3 + $0x8] sm:$0xff] %v226
    $region37: #{tpu_custom_call.1} parent=1 // pred_fallthru
      _
    %p237 = scmp.ne.s32.totalorder 0, 0
    // Predicated region
    $region38: #{tpu_custom_call.1} parent=1 // pred_check
      %p238 = pneg %p237
    $region39: #{tpu_custom_call.1} parent=1 // pred_check_branch
      %240 = sbr.rel (%p238) target = $region41
    $region40: #{tpu_custom_call.1} parent=1 // pred_region
      %v241 = vld [vmem:[#allocation2] sm:$0xff]
      %v242 = vld [vmem:[#allocation2 + $0x8] sm:$0xff]
      %v243 = vadd.f32 %v241, %v142
      %v244 = vadd.f32 %v242, %v147
      %245 = vst [vmem:[#allocation2] sm:$0xff] %v243
      %246 = vst [vmem:[#allocation2 + $0x8] sm:$0xff] %v244
      %v247 = vld [vmem:[#allocation3] sm:$0xff]
      %v248 = vld [vmem:[#allocation3 + $0x8] sm:$0xff]
      %v249 = vadd.f32 %v247, %v221
      %v250 = vadd.f32 %v248, %v226
      %251 = vst [vmem:[#allocation3] sm:$0xff] %v249
      %252 = vst [vmem:[#allocation3 + $0x8] sm:$0xff] %v250
    $region41: #{tpu_custom_call.1} parent=1 // pred_fallthru
      _
    // Predicated region
    $region42: #{tpu_custom_call.1} parent=1 // pred_check
      %p253 = pneg %p229
    $region43: #{tpu_custom_call.1} parent=1 // pred_check_branch
      %255 = sbr.rel (%p253) target = $region45
    $region44: #{tpu_custom_call.1} parent=1 // pred_region
      %v256 = vld [vmem:[#allocation2] sm:$0xff]
      %v257 = vld [vmem:[#allocation2 + $0x8] sm:$0xff]
      %v258 = vld [vmem:[%s3] sm:$0x1]
      %v260 = vlaneseq
      %v261 = vshrl.u32 %v260, 7
      %v262 = vsub.s32 0, %v261
      %v263 = vrot.slane %v258, %v262
      %v265 = vadd.f32 %v256, %v263
      %v266 = vadd.f32 %v257, %v263
      %v267 = vld [vmem:[#allocation3] sm:$0xff]
      %v268 = vld [vmem:[#allocation3 + $0x8] sm:$0xff]
      %v269 = vld [vmem:[%s4] sm:$0x1]
      %v271 = vlaneseq
      %v272 = vshrl.u32 %v271, 7
      %v273 = vsub.s32 0, %v272
      %v274 = vrot.slane %v269, %v273
      %v276 = vadd.f32 %v267, %v274
      %v277 = vadd.f32 %v268, %v274
      %v278 = vxor.u32 %v276, 2147483648
      %v279 = vxor.u32 %v277, 2147483648
      %v280 = vmul.f32 %v278, 1.442695
      %v281 = vpow.pop %v280
      %v282 = vmul.f32 %v279, 1.442695
      %v283 = vpow.pop %v282
      %v284 = vadd.f32 %v281, 1.0
      %v285 = vadd.f32 %v283, 1.0
      %v286 = vrcp.pop %v284
      %v287 = vmul.f32 1.0, %v286
      %v288 = vrcp.pop %v285
      %v289 = vmul.f32 1.0, %v288
      %v290 = vmul.f32 %v276, %v287
      %v291 = vmul.f32 %v277, %v289
      %v292 = vmul.f32 %v265, %v290
      %v293 = vmul.f32 %v266, %v291
      %294 = vst [vmem:[#allocation10] sm:$0xff] %v292
      %295 = vst [vmem:[#allocation10 + $0x8] sm:$0xff] %v293
    $region45: #{tpu_custom_call.1} parent=1 // pred_fallthru
      _
    // Predicated region
    $region46: #{tpu_custom_call.1} parent=1 // pred_check
      _
    $region47: #{tpu_custom_call.1} parent=1 // pred_check_branch
      %297 = sbr.rel (0) target = $region49
    $region48: #{tpu_custom_call.1} parent=1 // pred_region
      %s299 = ssub.s32 256, 256
      %300 = vsyncadd [#allocation6], %s299
      %s301 = sshll.u32 [#allocation10], 4
      %s302 = int_to_ptr.vmem [resolvable:$true] %s301
      %307 = dma.vmem_to_hbm [thread:$0]  %s302, 256, %s5, [#allocation6], 128, 128, 8
    $region49: #{tpu_custom_call.1} parent=1 // pred_fallthru
      _
    // Predicated region
    $region50: #{tpu_custom_call.1} parent=1 // pred_check
      _
    $region51: #{tpu_custom_call.1} parent=1 // pred_check_branch
      %309 = sbr.rel (0) target = $region53
    $region52: #{tpu_custom_call.1} parent=1 // pred_region
      %310 = dma.done [#allocation6], 256
    $region53: #{tpu_custom_call.1} parent=1 // pred_fallthru
      _
    %311 = vsyncpa [#allocation5], 1
    %312 = vsyncpa [#allocation8], 1
    %313 = vsyncpa [#allocation6], 1

</llo_original>
